<compile_context>
chip_gen: v7x
topology: tpu7x:2x2x1
jax: 0.10.0
libtpu: 0.0.40
codegen_flags: <defaults>
</compile_context>

<pallas_src>
import functools
import math

import jax
import jax.numpy as jnp
from jax import lax
from jax.experimental import pallas as pl
from jax.experimental.pallas import tpu as pltpu

LN_EPS = 1e-5
VMEM_LIMIT = 32 * 1024 * 1024


# ----------------------------- kernel helpers ------------------------------
def _layer_norm(h, w):
    mu = jnp.mean(h, axis=-1, keepdims=True)
    var = jnp.mean((h - mu) ** 2, axis=-1, keepdims=True)
    return (h - mu) * lax.rsqrt(var + LN_EPS) * w


def _softmax_last(a):
    m = jnp.max(a, axis=-1, keepdims=True)
    e = jnp.exp(a - m)
    return e * pl.reciprocal(jnp.sum(e, axis=-1, keepdims=True), approx=True)


# ------------------------------- Rotary ------------------------------------
def rotary_cache_kernel(cosf_ref, sinf_ref, cos_ref, sin_ref):
    # cosf/sinf: [T, dim//2]  ->  caches stacked over the qkv axis: [3, T, dim]
    cosf = cosf_ref[...]
    sinf = sinf_ref[...]
    emb_cos = jnp.concatenate([cosf, cosf], axis=-1)   # cat((freqs, freqs)).cos()
    emb_sin = jnp.concatenate([sinf, sinf], axis=-1)
    cos_ref[0] = emb_cos                               # q
    cos_ref[1] = emb_cos                               # k
    cos_ref[2] = jnp.ones_like(emb_cos)                # v slice filled with 1.0
    sin_ref[0] = emb_sin
    sin_ref[1] = emb_sin
    sin_ref[2] = jnp.zeros_like(emb_sin)               # v slice filled with 0.0


def rotary_cos_sin(seq_len, dim, base=10000.0):
    """Reproduces Rotary.forward: returns (cos, sin) of shape [1, T, 3, 1, dim]."""
    inv_freq = 1.0 / (base ** (jnp.arange(0, dim, 2, dtype=jnp.float32) / dim))
    t = jnp.arange(seq_len, dtype=jnp.float32)
    freqs = t[:, None] * inv_freq[None, :]             # einsum('i,j->ij')
    cosf, sinf = jnp.cos(freqs), jnp.sin(freqs)        # transcendentals in JAX
    cos3, sin3 = pl.pallas_call(
        rotary_cache_kernel,
        out_shape=(jax.ShapeDtypeStruct((3, seq_len, dim), jnp.float32),
                   jax.ShapeDtypeStruct((3, seq_len, dim), jnp.float32)),
        compiler_params=pltpu.CompilerParams(vmem_limit_bytes=VMEM_LIMIT),
    )(cosf, sinf)
    cos_cached = jnp.transpose(cos3, (1, 0, 2))[None, :, :, None, :]
    sin_cached = jnp.transpose(sin3, (1, 0, 2))[None, :, :, None, :]
    return cos_cached, sin_cached


# ------------------------------ DDiT block ----------------------------------
def ddit_block_kernel(x_ref, cos_ref, sin_ref, n1w_ref, n2w_ref, wqkv_ref,
                      wout_ref, sh_msa_ref, sc_msa_ref, g_msa_ref,
                      sh_mlp_ref, sc_mlp_ref, g_mlp_ref, o_ref, *, n_heads):
    x = x_ref[...]                                     # [B, T, C] f32
    B, T, C = x.shape
    hd = C // n_heads
    inv_sqrt = 1.0 / math.sqrt(hd)
    cos = cos_ref[...]                                 # [T, hd]
    sin = sin_ref[...]

    # adaLN modulation was hoisted to JAX; refs hold the six [B, C] vectors.
    h = _layer_norm(x, n1w_ref[...])
    h = (h * (1.0 + sc_msa_ref[...][:, None, :]) + sh_msa_ref[...][:, None, :]) \
        * g_msa_ref[...][:, None, :]

    # QKV projection: bf16 on the MXU, f32 accumulation.
    h2 = h.reshape(B * T, C).astype(jnp.bfloat16)
    qkv = jnp.dot(h2, wqkv_ref[...], preferred_element_type=jnp.float32)  # [B*T, 3C]

    def split_heads(m):                                # [T, C] -> [H, T, hd]
        # 2-D minor transpose + sublane-aligned split (free) + batched minor
        # transpose; avoids lane-sparse per-head slicing.
        return jnp.swapaxes(m.T.reshape(n_heads, hd, T), 1, 2)

    def rotate_half(m):                                # [..., hd]
        half = hd // 2
        return jnp.concatenate([-m[..., half:], m[..., :half]], axis=-1)

    outs = []
    for b in range(B):                                 # tiny static batch loop
        rows = qkv[b * T:(b + 1) * T]                  # [T, 3C]
        qh = split_heads(rows[:, 0 * C:1 * C])         # [H, T, hd]
        kh = split_heads(rows[:, 1 * C:2 * C])
        vh = split_heads(rows[:, 2 * C:3 * C])
        # apply Rotary caches (qkv * cos + rotate_half(qkv) * sin); the v slice
        # of the cache is identity (cos=1, sin=0) so v is left untouched.
        qh = qh * cos[None] + rotate_half(qh) * sin[None]
        kh = kh * cos[None] + rotate_half(kh) * sin[None]

        att = jnp.einsum('htd,hsd->hts', qh.astype(jnp.bfloat16),
                         kh.astype(jnp.bfloat16),
                         preferred_element_type=jnp.float32) * inv_sqrt
        att = _softmax_last(att)
        yh = jnp.einsum('hts,hsd->htd', att.astype(jnp.bfloat16),
                        vh.astype(jnp.bfloat16),
                        preferred_element_type=jnp.float32)          # [H, T, hd]
        outs.append(jnp.swapaxes(yh, 1, 2).reshape(C, T).T)          # [T, C]

    y = jnp.concatenate(outs, axis=0)                  # [B*T, C]
    y = jnp.dot(y.astype(jnp.bfloat16), wout_ref[...],
                preferred_element_type=jnp.float32).reshape(B, T, C)

    y = _layer_norm(y, n2w_ref[...])
    y = (y * (1.0 + sc_mlp_ref[...][:, None, :]) + sh_mlp_ref[...][:, None, :]) \
        * g_mlp_ref[...][:, None, :]

    # lane-dense store: [B, T*C] with T*C a multiple of 128.
    o_ref[...] = (y + x).reshape(B, T * C)


def ddit_block(x, mods, rot_cos, rot_sin, p, n_heads):
    B, T, C = x.shape
    kernel = functools.partial(ddit_block_kernel, n_heads=n_heads)
    out = pl.pallas_call(
        kernel,
        out_shape=jax.ShapeDtypeStruct((B, T * C), jnp.float32),
        compiler_params=pltpu.CompilerParams(vmem_limit_bytes=VMEM_LIMIT),
    )(x, rot_cos, rot_sin, p["norm1_w"], p["norm2_w"], p["w_qkv"], p["w_out"],
      *mods)
    return out.reshape(B, T, C)


# ---------------------------- DDiT final layer -------------------------------
def final_layer_kernel(x_ref, shift_ref, scale_ref, idx_ref, esig_ref, nfw_ref,
                       wlin_ref, blin_ref, o_ref, *, log_vm1, tv):
    x = x_ref[...]                                     # [B, T, H]
    B, T, H = x.shape

    h = _layer_norm(x, nfw_ref[...])
    h = h * (1.0 + scale_ref[...][:, None, :]) + shift_ref[...][:, None, :]

    h2 = h.reshape(B * T, H).astype(jnp.bfloat16)
    logits = jnp.dot(h2, wlin_ref[...], preferred_element_type=jnp.float32) \
        + blin_ref[...]                                # [B*T, tv]
    logits = logits.reshape(B, T, tv)
    logits = logits - esig_ref[...][:, :, None] - log_vm1

    # scatter zeros at the input token id (global vocab column for this tile)
    col = lax.broadcasted_iota(jnp.int32, (B, T, tv), 2) + pl.program_id(0) * tv
    o_ref[...] = jnp.where(col == idx_ref[...], 0.0, logits)


def final_layer(x, shift, scale, indices, esig, p, vocab_size):
    B, T, H = x.shape
    V = vocab_size
    tv = V if V <= 512 else 512                        # vocab tiling (v7x VMEM)
    assert V % tv == 0
    idx3 = indices.astype(jnp.int32)[..., None]        # [B, T, 1]
    kernel = functools.partial(final_layer_kernel, log_vm1=math.log(V - 1), tv=tv)
    return pl.pallas_call(
        kernel,
        out_shape=jax.ShapeDtypeStruct((B, T, V), jnp.float32),
        grid=(V // tv,),
        in_specs=[
            pl.BlockSpec((B, T, H), lambda j: (0, 0, 0)),   # x (grid-invariant)
            pl.BlockSpec((B, H), lambda j: (0, 0)),         # shift
            pl.BlockSpec((B, H), lambda j: (0, 0)),         # scale
            pl.BlockSpec((B, T, 1), lambda j: (0, 0, 0)),   # indices
            pl.BlockSpec((B, 1), lambda j: (0, 0)),         # log(expm1(sigma))
            pl.BlockSpec((1, H), lambda j: (0, 0)),         # norm_final weight
            pl.BlockSpec((H, tv), lambda j: (0, j)),        # W_lin vocab tile
            pl.BlockSpec((1, tv), lambda j: (0, j)),        # b_lin vocab tile
        ],
        out_specs=pl.BlockSpec((B, T, tv), lambda j: (0, 0, j)),
        compiler_params=pltpu.CompilerParams(
            dimension_semantics=("parallel",),
            vmem_limit_bytes=VMEM_LIMIT),
    )(x, shift, scale, idx3, esig, p["normf_w"], p["w_lin"], p["b_lin"])


# -------------------------------- glue (JAX) --------------------------------
def timestep_embedding(t, dim):
    half = dim // 2
    freqs = jnp.exp(-math.log(10000.0) *
                    jnp.arange(half, dtype=jnp.float32) / half)
    args = t[:, None].astype(jnp.float32) * freqs[None]
    return jnp.concatenate([jnp.cos(args), jnp.sin(args)], axis=-1)


def positional_encoding_table(max_len, d_model):
    position = jnp.arange(max_len, dtype=jnp.float32)[:, None]
    div_term = jnp.exp(jnp.arange(0, d_model, 2, dtype=jnp.float32)
                       * (-math.log(10000.0) / d_model))
    pe = jnp.zeros((max_len, 1, d_model), jnp.float32)
    pe = pe.at[:, 0, 0::2].set(jnp.sin(position * div_term))
    pe = pe.at[:, 0, 1::2].set(jnp.cos(position * div_term))
    return pe


def sedd_forward(indices, sigma, params, n_heads, vocab_size):
    x = params["embedding"][indices]                          # [B, T, C]
    B, T, C = x.shape

    t_freq = timestep_embedding(sigma, 256)
    h = jax.nn.silu(t_freq @ params["t_w1"] + params["t_b1"])
    t_emb = h @ params["t_w2"] + params["t_b2"]
    timestamp = jax.nn.silu(t_emb)                            # [B, cond_dim]

    # positional encoding (reproduces the PyTorch broadcast: pe[:B] over T)
    x = x + params["pe"][:B]

    # Rotary caches (exact module output), then the per-head [T, hd] slices
    # used for q/k inside the block kernel (the v slice is identity).
    hd = C // n_heads
    cos_cached, sin_cached = rotary_cos_sin(T, hd)
    rot_cos = cos_cached[0, :, 0, 0, :]                       # [T, hd]
    rot_sin = sin_cached[0, :, 0, 0, :]

    for bp in params["blocks"]:
        mod = timestamp @ bp["w_ada"] + bp["b_ada"]           # hoisted adaLN
        mods = tuple(mod[:, i * C:(i + 1) * C] for i in range(6))
        x = ddit_block(x, mods, rot_cos, rot_sin, bp, n_heads)

    esig = jnp.log(jnp.where(sigma < 0.5, jnp.expm1(sigma),
                             jnp.exp(sigma) - 1.0))[:, None]  # [B, 1]
    modf = timestamp @ params["final"]["w_ada"] + params["final"]["b_ada"]
    shift_f, scale_f = modf[:, :C], modf[:, C:]
    return final_layer(x, shift_f, scale_f, indices, esig, params["final"],
                       vocab_size)


# ------------------------------ param init ----------------------------------
def init_params(key, hidden, n_heads, cond_dim, n_blocks, vocab_size,
                max_len=64):
    def nrm(k, shape, s=0.05):
        return (s * jax.random.normal(k, shape)).astype(jnp.float32)

    keys = iter(jax.random.split(key, 8 + 8 * n_blocks + 8))
    p = {
        "embedding": nrm(next(keys), (vocab_size, hidden), 0.5),
        "pe": positional_encoding_table(max_len, hidden),
        "t_w1": nrm(next(keys), (256, cond_dim)),
        "t_b1": nrm(next(keys), (cond_dim,), 0.01),
        "t_w2": nrm(next(keys), (cond_dim, cond_dim)),
        "t_b2": nrm(next(keys), (cond_dim,), 0.01),
        "blocks": [],
    }
    for _ in range(n_blocks):
        p["blocks"].append({
            "norm1_w": 1.0 + nrm(next(keys), (1, hidden), 0.02),
            "w_qkv": nrm(next(keys), (hidden, 3 * hidden)).astype(jnp.bfloat16),
            "w_out": nrm(next(keys), (hidden, hidden)).astype(jnp.bfloat16),
            "norm2_w": 1.0 + nrm(next(keys), (1, hidden), 0.02),
            "w_ada": nrm(next(keys), (cond_dim, 6 * hidden)),
            "b_ada": nrm(next(keys), (1, 6 * hidden), 0.02),
        })
    p["final"] = {
        "normf_w": 1.0 + nrm(next(keys), (1, hidden), 0.02),
        "w_ada": nrm(next(keys), (cond_dim, 2 * hidden)),
        "b_ada": nrm(next(keys), (1, 2 * hidden), 0.02),
        "w_lin": nrm(next(keys), (hidden, vocab_size)).astype(jnp.bfloat16),
        "b_lin": nrm(next(keys), (1, vocab_size), 0.02),
    }
    return p


# ---------------------------------- main -------------------------------------
if __name__ == "__main__":
    B, T = 2, 16
    HIDDEN, N_HEADS, COND_DIM, N_BLOCKS = 32, 4, 32, 2
    TOKENS = 63
    VOCAB = TOKENS + 1
    HD = HIDDEN // N_HEADS

    params = init_params(jax.random.PRNGKey(0), HIDDEN, N_HEADS, COND_DIM,
                         N_BLOCKS, VOCAB)

    k_idx, k_sig = jax.random.split(jax.random.PRNGKey(0))
    indices = jax.random.randint(k_idx, (B, T), 0, VOCAB, dtype=jnp.int32)
    sigma = jax.random.uniform(k_sig, (B,), dtype=jnp.float32,
                               minval=0.05, maxval=1.0)

    # ---- verify the Rotary module's forward (the spec) against pure JAX ----
    cos_c, sin_c = rotary_cos_sin(T, HD)
    inv_freq = 1.0 / (10000.0 ** (jnp.arange(0, HD, 2, dtype=jnp.float32) / HD))
    freqs = jnp.arange(T, dtype=jnp.float32)[:, None] * inv_freq[None, :]
    emb = jnp.concatenate([freqs, freqs], axis=-1)
    ref_cos = jnp.tile(jnp.cos(emb)[None, :, None, None, :], (1, 1, 3, 1, 1))
    ref_cos = ref_cos.at[:, :, 2].set(1.0)
    ref_sin = jnp.tile(jnp.sin(emb)[None, :, None, None, :], (1, 1, 3, 1, 1))
    ref_sin = ref_sin.at[:, :, 2].set(0.0)
    cos_c = jax.block_until_ready(cos_c)
    assert cos_c.shape == (1, T, 3, 1, HD) and sin_c.shape == (1, T, 3, 1, HD)
    assert bool(jnp.allclose(cos_c, ref_cos, atol=1e-6))
    assert bool(jnp.allclose(sin_c, ref_sin, atol=1e-6))

    # ---- full SEDD forward using the Pallas kernels ----
    out = sedd_forward(indices, sigma, params, N_HEADS, VOCAB)
    out = jax.block_until_ready(out)
    assert out.shape == (B, T, VOCAB) and out.dtype == jnp.float32
    assert bool(jnp.all(jnp.isfinite(out)))
    print("KERNEL_OK")
</pallas_src>

<mosaic_0001>
module attributes {stable_mosaic.version = 11 : i64} {
  func.func @rotary_cache_kernel(%arg0: memref<16x4xf32, #tpu.memory_space<vmem>>, %arg1: memref<16x4xf32, #tpu.memory_space<vmem>>, %arg2: memref<3x16x8xf32, #tpu.memory_space<vmem>>, %arg3: memref<3x16x8xf32, #tpu.memory_space<vmem>>) attributes {dimension_semantics = [], scalar_prefetch = 0 : i64, scratch_operands = 0 : i64, tpu.core_type = #tpu.core_type<tc>} {
    %c0 = arith.constant 0 : index
    %c0_0 = arith.constant 0 : index
    %0 = vector.load %arg0[%c0, %c0_0] : memref<16x4xf32, #tpu.memory_space<vmem>>, vector<16x4xf32>
    %c0_1 = arith.constant 0 : index
    %c0_2 = arith.constant 0 : index
    %1 = vector.load %arg1[%c0_1, %c0_2] : memref<16x4xf32, #tpu.memory_space<vmem>>, vector<16x4xf32>
    %2 = tpu.concatenate %0, %0 in 1 : vector<16x4xf32>, vector<16x4xf32> -> vector<16x8xf32>
    %3 = tpu.concatenate %1, %1 in 1 : vector<16x4xf32>, vector<16x4xf32> -> vector<16x8xf32>
    %c0_3 = arith.constant 0 : index
    %c0_4 = arith.constant 0 : index
    %c0_5 = arith.constant 0 : index
    %4 = vector.load %arg2[%c0_3, %c0_4, %c0_5] : memref<3x16x8xf32, #tpu.memory_space<vmem>>, vector<1x16x8xf32>
    %5 = vector.shape_cast %4 : vector<1x16x8xf32> to vector<16x8xf32>
    %6 = vector.shape_cast %2 : vector<16x8xf32> to vector<1x16x8xf32>
    tpu.vector_store %arg2[%c0_3, %c0_4, %c0_5], %6 {strides = array<i32>} : memref<3x16x8xf32, #tpu.memory_space<vmem>>, vector<1x16x8xf32>,
    %c1 = arith.constant 1 : index
    %c0_6 = arith.constant 0 : index
    %c0_7 = arith.constant 0 : index
    %7 = vector.load %arg2[%c1, %c0_6, %c0_7] : memref<3x16x8xf32, #tpu.memory_space<vmem>>, vector<1x16x8xf32>
    %8 = vector.shape_cast %7 : vector<1x16x8xf32> to vector<16x8xf32>
    %9 = vector.shape_cast %2 : vector<16x8xf32> to vector<1x16x8xf32>
    tpu.vector_store %arg2[%c1, %c0_6, %c0_7], %9 {strides = array<i32>} : memref<3x16x8xf32, #tpu.memory_space<vmem>>, vector<1x16x8xf32>,
    %cst = arith.constant 1.000000e+00 : f32
    %10 = vector.broadcast %cst : f32 to vector<16x8xf32>
    %c2 = arith.constant 2 : index
    %c0_8 = arith.constant 0 : index
    %c0_9 = arith.constant 0 : index
    %11 = vector.load %arg2[%c2, %c0_8, %c0_9] : memref<3x16x8xf32, #tpu.memory_space<vmem>>, vector<1x16x8xf32>
    %12 = vector.shape_cast %11 : vector<1x16x8xf32> to vector<16x8xf32>
    %13 = vector.shape_cast %10 : vector<16x8xf32> to vector<1x16x8xf32>
    tpu.vector_store %arg2[%c2, %c0_8, %c0_9], %13 {strides = array<i32>} : memref<3x16x8xf32, #tpu.memory_space<vmem>>, vector<1x16x8xf32>,
    %c0_10 = arith.constant 0 : index
    %c0_11 = arith.constant 0 : index
    %c0_12 = arith.constant 0 : index
    %14 = vector.load %arg3[%c0_10, %c0_11, %c0_12] : memref<3x16x8xf32, #tpu.memory_space<vmem>>, vector<1x16x8xf32>
    %15 = vector.shape_cast %14 : vector<1x16x8xf32> to vector<16x8xf32>
    %16 = vector.shape_cast %3 : vector<16x8xf32> to vector<1x16x8xf32>
    tpu.vector_store %arg3[%c0_10, %c0_11, %c0_12], %16 {strides = array<i32>} : memref<3x16x8xf32, #tpu.memory_space<vmem>>, vector<1x16x8xf32>,
    %c1_13 = arith.constant 1 : index
    %c0_14 = arith.constant 0 : index
    %c0_15 = arith.constant 0 : index
    %17 = vector.load %arg3[%c1_13, %c0_14, %c0_15] : memref<3x16x8xf32, #tpu.memory_space<vmem>>, vector<1x16x8xf32>
    %18 = vector.shape_cast %17 : vector<1x16x8xf32> to vector<16x8xf32>
    %19 = vector.shape_cast %3 : vector<16x8xf32> to vector<1x16x8xf32>
    tpu.vector_store %arg3[%c1_13, %c0_14, %c0_15], %19 {strides = array<i32>} : memref<3x16x8xf32, #tpu.memory_space<vmem>>, vector<1x16x8xf32>,
    %cst_16 = arith.constant 0.000000e+00 : f32
    %20 = vector.broadcast %cst_16 : f32 to vector<16x8xf32>
    %c2_17 = arith.constant 2 : index
    %c0_18 = arith.constant 0 : index
    %c0_19 = arith.constant 0 : index
    %21 = vector.load %arg3[%c2_17, %c0_18, %c0_19] : memref<3x16x8xf32, #tpu.memory_space<vmem>>, vector<1x16x8xf32>
    %22 = vector.shape_cast %21 : vector<1x16x8xf32> to vector<16x8xf32>
    %23 = vector.shape_cast %20 : vector<16x8xf32> to vector<1x16x8xf32>
    tpu.vector_store %arg3[%c2_17, %c0_18, %c0_19], %23 {strides = array<i32>} : memref<3x16x8xf32, #tpu.memory_space<vmem>>, vector<1x16x8xf32>,
    return
  }
}

</mosaic_0001>

<llo_original>
// kernel: tpu_custom_call.1
$region0: #{tpu_custom_call.1}
  #allocation0 [shape = 'u32[]', space=smem, size = 0x4, offset = 0x4, fixed_abs, tag = 'smem constant byte address 0x4 - core index']
  #allocation1 [shape = 'u32[144,128]{1,0:T(1,128)}', space=vmem, size = 0x12000, scoped, tag = 'internal scratch']
  %s0 = inlined_call_operand.vmem [shape: f32[16,4], index: 0, kind: input, shape index: {}]
  %s1 = inlined_call_operand.vmem [shape: f32[16,4], index: 1, kind: input, shape index: {}]
  %s2 = inlined_call_operand.vmem [shape: f32[3,16,8], index: 2, kind: output, shape index: {0}]
  %s3 = inlined_call_operand.vmem [shape: f32[3,16,8], index: 3, kind: output, shape index: {1}]
  %4 = xla_tuple %s2, %s3
  %s5 = sld [smem:[#allocation0]]
  $region26: #{tpu_custom_call.1} parent=0
    _
  %s7 = ssub.s32 1, %s5
  %s8 = scalar_select 0, %s7, %s5
  // Predicated region
  $region2: #{tpu_custom_call.1} parent=0 // pred_check
    _
  $region3: #{tpu_custom_call.1} parent=0 // pred_check_branch
    %10 = sbr.rel (0) target = $region5
  $region4: #{tpu_custom_call.1} parent=0 // pred_region
    _
  $region5: #{tpu_custom_call.1} parent=0 // pred_fallthru
    _
  // Predicated region
  $region6: #{tpu_custom_call.1} parent=0 // pred_check
    _
  $region7: #{tpu_custom_call.1} parent=0 // pred_check_branch
    %12 = sbr.rel (0) target = $region9
  $region8: #{tpu_custom_call.1} parent=0 // pred_region
    _
  $region9: #{tpu_custom_call.1} parent=0 // pred_fallthru
    _
  %v13 = vld [vmem:[%s0] sm:$0xff]
  %v14 = vld [vmem:[%s0 + $0x8] sm:$0xff]
  %v15 = vld [vmem:[%s1] sm:$0xff]
  %v16 = vld [vmem:[%s1 + $0x8] sm:$0xff]
  %19 = vrot.lane.b32.xlu0 %v13, 4
  %v20 = vpop.permute.xlu0 %19
  %21 = vrot.lane.b32.xlu0 %v14, 4
  %v22 = vpop.permute.xlu0 %21
  %vm25 = vcmask 31744
  %v26 = vsel %vm25, %v13, %v20
  %v27 = vsel %vm25, %v14, %v22
  %30 = vrot.lane.b32.xlu0 %v15, 4
  %v31 = vpop.permute.xlu0 %30
  %32 = vrot.lane.b32.xlu0 %v16, 4
  %v33 = vpop.permute.xlu0 %32
  %v36 = vsel %vm25, %v15, %v31
  %v37 = vsel %vm25, %v16, %v33
  %vm38 = vcmask 64512
  %39 = vst.msk [vmem:[%s2] sm:$0xff] %vm38, %v26
  %40 = vst.msk [vmem:[%s2 + $0x8] sm:$0xff] %vm38, %v27
  %s41 = scalar_lea.vmem %s2, 16
  %42 = vst.msk [vmem:[%s41] sm:$0xff] %vm38, %v26
  %43 = vst.msk [vmem:[%s41 + $0x8] sm:$0xff] %vm38, %v27
  %s44 = scalar_lea.vmem %s2, 32
  %45 = vst.msk [vmem:[%s44] sm:$0xff] %vm38, 1.0
  %46 = vst.msk [vmem:[%s44 + $0x8] sm:$0xff] %vm38, 1.0
  %47 = vst.msk [vmem:[%s3] sm:$0xff] %vm38, %v36
  %48 = vst.msk [vmem:[%s3 + $0x8] sm:$0xff] %vm38, %v37
  %s49 = scalar_lea.vmem %s3, 16
  %50 = vst.msk [vmem:[%s49] sm:$0xff] %vm38, %v36
  %51 = vst.msk [vmem:[%s49 + $0x8] sm:$0xff] %vm38, %v37
  %s52 = scalar_lea.vmem %s3, 32
  %53 = vst.msk [vmem:[%s52] sm:$0xff] %vm38, 0.0
  %54 = vst.msk [vmem:[%s52 + $0x8] sm:$0xff] %vm38, 0.0
  // Predicated region
  $region10: #{tpu_custom_call.1} parent=0 // pred_check
    _
  $region11: #{tpu_custom_call.1} parent=0 // pred_check_branch
    %56 = sbr.rel (0) target = $region13
  $region12: #{tpu_custom_call.1} parent=0 // pred_region
    _
  $region13: #{tpu_custom_call.1} parent=0 // pred_fallthru
    _
  // Predicated region
  $region14: #{tpu_custom_call.1} parent=0 // pred_check
    _
  $region15: #{tpu_custom_call.1} parent=0 // pred_check_branch
    %58 = sbr.rel (0) target = $region17
  $region16: #{tpu_custom_call.1} parent=0 // pred_region
    _
  $region17: #{tpu_custom_call.1} parent=0 // pred_fallthru
    _
  // Predicated region
  $region18: #{tpu_custom_call.1} parent=0 // pred_check
    _
  $region19: #{tpu_custom_call.1} parent=0 // pred_check_branch
    %60 = sbr.rel (0) target = $region21
  $region20: #{tpu_custom_call.1} parent=0 // pred_region
    _
  $region21: #{tpu_custom_call.1} parent=0 // pred_fallthru
    _
  // Predicated region
  $region22: #{tpu_custom_call.1} parent=0 // pred_check
    _
  $region23: #{tpu_custom_call.1} parent=0 // pred_check_branch
    %62 = sbr.rel (0) target = $region25
  $region24: #{tpu_custom_call.1} parent=0 // pred_region
    _
  $region25: #{tpu_custom_call.1} parent=0 // pred_fallthru
    _

</llo_original>
